<compile_context>
chip_gen: v5e
topology: v5e:2x2
jax: 0.10.0
libtpu: 0.0.40
codegen_flags: <defaults>
</compile_context>

<pallas_src>
import functools

import jax
import jax.numpy as jnp
from jax.experimental import pallas as pl
from jax.experimental.pallas import tpu as pltpu


def _round_up(x, m):
    return (x + m - 1) // m * m


def _largest_divisor_tile(dim, candidates):
    for c in candidates:
        if dim % c == 0:
            return c
    return dim


# ----------------------------- kernels --------------------------------------

def linear_kernel_f32_out(x_ref, w_ref, b_ref, o_ref):
    """f32 output: accumulate straight into the resident output block."""
    k = pl.program_id(2)

    @pl.when(k == 0)
    def _():
        o_ref[...] = jnp.zeros_like(o_ref)

    o_ref[...] += jnp.dot(x_ref[...], w_ref[...],
                          preferred_element_type=jnp.float32)

    @pl.when(k == pl.num_programs(2) - 1)
    def _():
        o_ref[...] += b_ref[...]          # (1, tn) broadcasts over (tm, tn)


def linear_kernel_lowp_out(x_ref, w_ref, b_ref, o_ref, acc_ref):
    """Low-precision (e.g. bf16) output: keep an f32 scratch accumulator."""
    k = pl.program_id(2)

    @pl.when(k == 0)
    def _():
        acc_ref[...] = jnp.zeros_like(acc_ref)

    acc_ref[...] += jnp.dot(x_ref[...], w_ref[...],
                            preferred_element_type=jnp.float32)

    @pl.when(k == pl.num_programs(2) - 1)
    def _():
        o_ref[...] = (acc_ref[...] + b_ref[...]).astype(o_ref.dtype)


# ----------------------------- wrapper ---------------------------------------

def prepare_params(w, b, *, use_bf16=False):
    """Pad + cast the nn.Linear parameters ONCE (not per forward call).

    w: (num_classes, input_dim)  -- PyTorch layout
    b: (num_classes,)
    Returns (wp, bp, input_dim, num_classes) with
      wp: (D_pad, C_pad) in f32 or bf16, bp: (1, C_pad) in f32.
    Padding is zero, so padded K rows / padded class columns contribute nothing
    (this invariant is what keeps the sliced-back logits exact).
    """
    C, D = w.shape
    assert b.shape == (C,)
    in_dtype = jnp.bfloat16 if use_bf16 else jnp.float32
    D_pad = _round_up(D, 128)     # lane-dense contraction dim (MXU K occupancy)
    C_pad = _round_up(C, 128)     # lane-dense output dim (unmasked vst)
    wp = jnp.zeros((D_pad, C_pad), in_dtype).at[:D, :C].set(w.T.astype(in_dtype))
    bp = jnp.zeros((1, C_pad), jnp.float32).at[:, :C].set(
        b.reshape(1, C).astype(jnp.float32))
    return wp, bp, D, C


def multiclass_forward(x, wp, bp, *, num_classes, out_bf16=False):
    """x: (B, D) activations; wp/bp: pre-padded params from prepare_params.

    Returns logits (B, num_classes), matching x @ W.T + b.
    """
    B, D = x.shape
    D_pad, C_pad = wp.shape
    assert D <= D_pad and num_classes <= C_pad and bp.shape == (1, C_pad)

    in_dtype = wp.dtype
    use_bf16 = in_dtype == jnp.bfloat16
    out_dtype = jnp.bfloat16 if out_bf16 else jnp.float32
    bytes_in = 2 if use_bf16 else 4
    bytes_out = 2 if out_bf16 else 4
    sub = 16 if use_bf16 else 8   # bf16 packs 2 rows / sublane

    # Batch tiling: keep ceil(B_pad/tm) as small as possible — the weight is
    # re-streamed from HBM once per i block, so W traffic = (B_pad/tm)*D*C bytes.
    if B <= 512:
        B_pad = _round_up(B, sub)
        tm = B_pad
    else:
        B_pad = _round_up(B, 256)
        tm = 256

    xp = x.astype(in_dtype)
    if B_pad != B or D_pad != D:
        xp = jnp.pad(xp, ((0, B_pad - B), (0, D_pad - D)))

    # K / N tiles as large as comfortably double-buffers on every generation
    # (re-derived against v7x's 64 MiB physical VMEM below via vmem_limit).
    tk = D_pad if D_pad <= 2048 else _largest_divisor_tile(
        D_pad, (2048, 1024, 512, 256, 128))
    tn = C_pad if C_pad <= 512 else _largest_divisor_tile(
        C_pad, (512, 256, 128))
    # v7x has 2 TensorCores: keep at least one "parallel" grid axis >= 2 when
    # the class dim is big enough to split (no-op on single-TC v5e/v6e).
    if B_pad // tm == 1 and C_pad // tn == 1 and C_pad % 256 == 0:
        tn = C_pad // 2

    grid = (B_pad // tm, C_pad // tn, D_pad // tk)

    # Advisory cost: account for re-streaming (x re-read per j block, W per i).
    cost = pl.CostEstimate(
        flops=2 * B_pad * D_pad * C_pad,
        transcendentals=0,
        bytes_accessed=(B_pad * D_pad * bytes_in * (C_pad // tn)
                        + D_pad * C_pad * bytes_in * (B_pad // tm)
                        + C_pad * 4 * (B_pad // tm)
                        + B_pad * C_pad * bytes_out),
    )

    use_scratch = out_dtype != jnp.float32
    # Double-buffered working set (+ accumulator scratch if any), x2 headroom,
    # clamped: >= 16 MiB (v5e scoped default), <= 48 MiB (under v7x's 64 MiB).
    working = (2 * (tm * tk + tk * tn) * bytes_in
               + 2 * tn * 4
               + 2 * tm * tn * bytes_out
               + (tm * tn * 4 if use_scratch else 0))
    vmem_limit = int(min(max(2 * working, 16 * 1024 * 1024), 48 * 1024 * 1024))

    common = dict(
        out_shape=jax.ShapeDtypeStruct((B_pad, C_pad), out_dtype),
        grid=grid,
        in_specs=[
            pl.BlockSpec((tm, tk), lambda i, j, k: (i, k)),   # activations
            pl.BlockSpec((tk, tn), lambda i, j, k: (k, j)),   # weight (dominant stream)
            pl.BlockSpec((1, tn), lambda i, j, k: (0, j)),    # bias
        ],
        out_specs=pl.BlockSpec((tm, tn), lambda i, j, k: (i, j)),
        compiler_params=pltpu.CompilerParams(
            dimension_semantics=("parallel", "parallel", "arbitrary"),
            vmem_limit_bytes=vmem_limit),
        cost_estimate=cost,
    )

    if use_scratch:
        out = pl.pallas_call(
            linear_kernel_lowp_out,
            scratch_shapes=[pltpu.VMEM((tm, tn), jnp.float32)],
            **common)(xp, wp, bp)
    else:
        out = pl.pallas_call(linear_kernel_f32_out, **common)(xp, wp, bp)

    return out[:B, :num_classes]


# ------------------------------- demo ----------------------------------------

if __name__ == "__main__":
    key = jax.random.PRNGKey(0)
    kx, kw, kb = jax.random.split(key, 3)

    batch, input_dim, num_classes = 8, 32, 8

    # Mirror nn.Linear default init: U(-1/sqrt(fan_in), 1/sqrt(fan_in)),
    # weight in PyTorch layout (num_classes, input_dim).
    bound = 1.0 / jnp.sqrt(jnp.float32(input_dim))
    w = jax.random.uniform(kw, (num_classes, input_dim), jnp.float32,
                           minval=-bound, maxval=bound)
    b = jax.random.uniform(kb, (num_classes,), jnp.float32,
                           minval=-bound, maxval=bound)
    x = jax.random.normal(kx, (batch, input_dim), jnp.float32)

    # Pad / cast the parameters ONCE, outside the jit'd per-call forward.
    # (use_bf16=True for production shapes on v6e/v7x; f32 here so the
    #  tight-tolerance check against the f32 reference holds.)
    wp, bp, _, _ = prepare_params(w, b, use_bf16=False)

    fwd = jax.jit(functools.partial(multiclass_forward,
                                    num_classes=num_classes, out_bf16=False))
    logits = fwd(x, wp, bp)
    jax.block_until_ready(logits)

    # Reference: nn.Linear forward.
    ref = x @ w.T + b
    assert logits.shape == (batch, num_classes)
    assert jnp.allclose(logits, ref, atol=1e-5, rtol=1e-5)

    print("KERNEL_OK")
</pallas_src>

<mosaic_0001>
module attributes {stable_mosaic.version = 11 : i64} {
  func.func @linear_kernel_f32_out(%arg0: i32, %arg1: i32, %arg2: i32, %arg3: memref<8x128xf32, #tpu.memory_space<vmem>>, %arg4: memref<128x128xf32, #tpu.memory_space<vmem>>, %arg5: memref<1x128xf32, #tpu.memory_space<vmem>>, %arg6: memref<8x128xf32, #tpu.memory_space<vmem>>) attributes {dimension_semantics = [#tpu.dimension_semantics<parallel>, #tpu.dimension_semantics<parallel>, #tpu.dimension_semantics<arbitrary>], iteration_bounds = array<i64: 1, 1, 1>, scalar_prefetch = 0 : i64, scratch_operands = 0 : i64, tpu.core_type = #tpu.core_type<tc>, window_params = [{transform_indices = @transform_0, window_bounds = array<i64: 8, 128>}, {transform_indices = @transform_1, window_bounds = array<i64: 128, 128>}, {transform_indices = @transform_2, window_bounds = array<i64: 1, 128>}, {transform_indices = @transform_3, window_bounds = array<i64: 8, 128>}]} {
    %c0_i32 = arith.constant 0 : i32
    %0 = arith.cmpi eq, %arg2, %c0_i32 : i32
    %1 = arith.extui %0 : i1 to i32
    %c0_i32_0 = arith.constant 0 : i32
    %2 = arith.cmpi ne, %1, %c0_i32_0 : i32
    scf.if %2 {
      %cst_10 = arith.constant 0.000000e+00 : f32
      %12 = vector.broadcast %cst_10 : f32 to vector<8x128xf32>
      %c0_11 = arith.constant 0 : index
      %c0_12 = arith.constant 0 : index
      %13 = vector.load %arg6[%c0_11, %c0_12] : memref<8x128xf32, #tpu.memory_space<vmem>>, vector<8x128xf32>
      tpu.vector_store %arg6[%c0_11, %c0_12], %12 {strides = array<i32>} : memref<8x128xf32, #tpu.memory_space<vmem>>, vector<8x128xf32>,
    } else {
    }
    %c0 = arith.constant 0 : index
    %c0_1 = arith.constant 0 : index
    %3 = vector.load %arg6[%c0, %c0_1] : memref<8x128xf32, #tpu.memory_space<vmem>>, vector<8x128xf32>
    %c0_2 = arith.constant 0 : index
    %c0_3 = arith.constant 0 : index
    %4 = vector.load %arg3[%c0_2, %c0_3] : memref<8x128xf32, #tpu.memory_space<vmem>>, vector<8x128xf32>
    %c0_4 = arith.constant 0 : index
    %c0_5 = arith.constant 0 : index
    %5 = vector.load %arg4[%c0_4, %c0_5] : memref<128x128xf32, #tpu.memory_space<vmem>>, vector<128x128xf32>
    %cst = arith.constant dense<0.000000e+00> : vector<8x128xf32>
    %6 = tpu.matmul %4, %5, %cst {dimension_numbers = #tpu.dot_dimension_numbers<[1], [0], [0], [1], [0, 0, 1, 1], [], []>} : vector<8x128xf32>, vector<128x128xf32>, vector<8x128xf32> -> vector<8x128xf32>
    %7 = arith.addf %3, %6 : vector<8x128xf32>
    %c0_6 = arith.constant 0 : index
    %c0_7 = arith.constant 0 : index
    %8 = vector.load %arg6[%c0_6, %c0_7] : memref<8x128xf32, #tpu.memory_space<vmem>>, vector<8x128xf32>
    tpu.vector_store %arg6[%c0_6, %c0_7], %7 {strides = array<i32>} : memref<8x128xf32, #tpu.memory_space<vmem>>, vector<8x128xf32>,
    %c0_i32_8 = arith.constant 0 : i32
    %9 = arith.cmpi eq, %arg2, %c0_i32_8 : i32
    %10 = arith.extui %9 : i1 to i32
    %c0_i32_9 = arith.constant 0 : i32
    %11 = arith.cmpi ne, %10, %c0_i32_9 : i32
    scf.if %11 {
      %c0_10 = arith.constant 0 : index
      %c0_11 = arith.constant 0 : index
      %12 = vector.load %arg6[%c0_10, %c0_11] : memref<8x128xf32, #tpu.memory_space<vmem>>, vector<8x128xf32>
      %c0_12 = arith.constant 0 : index
      %c0_13 = arith.constant 0 : index
      %13 = vector.load %arg5[%c0_12, %c0_13] : memref<1x128xf32, #tpu.memory_space<vmem>>, vector<1x128xf32>
      %14 = vector.broadcast %13 : vector<1x128xf32> to vector<8x128xf32>
      %15 = arith.addf %12, %14 : vector<8x128xf32>
      %c0_14 = arith.constant 0 : index
      %c0_15 = arith.constant 0 : index
      %16 = vector.load %arg6[%c0_14, %c0_15] : memref<8x128xf32, #tpu.memory_space<vmem>>, vector<8x128xf32>
      tpu.vector_store %arg6[%c0_14, %c0_15], %15 {strides = array<i32>} : memref<8x128xf32, #tpu.memory_space<vmem>>, vector<8x128xf32>,
    } else {
    }
    return
  }
  func.func @transform_0(%arg0: i32, %arg1: i32, %arg2: i32) -> (i32, i32) {
    %c0_i32 = arith.constant 0 : i32
    return %arg0, %arg2 : i32, i32
  }
  func.func @transform_1(%arg0: i32, %arg1: i32, %arg2: i32) -> (i32, i32) {
    %c0_i32 = arith.constant 0 : i32
    return %arg2, %arg1 : i32, i32
  }
  func.func @transform_2(%arg0: i32, %arg1: i32, %arg2: i32) -> (i32, i32) {
    %c0_i32 = arith.constant 0 : i32
    %c0_i32_0 = arith.constant 0 : i32
    return %c0_i32, %arg1 : i32, i32
  }
  func.func @transform_3(%arg0: i32, %arg1: i32, %arg2: i32) -> (i32, i32) {
    %c0_i32 = arith.constant 0 : i32
    return %arg0, %arg1 : i32, i32
  }
}

</mosaic_0001>

<llo_original>
// kernel: multiclass_forward.1
$region0: #{multiclass_forward.1}
  #allocation0 [shape = 'u32[]', space=smem, size = 0x4, offset = 0x4, fixed_abs, tag = 'smem constant byte address 0x4 - core index']
  #allocation1 [shape = 'u32[72,128]{1,0:T(1,128)}', space=vmem, size = 0x9000, scoped, tag = 'internal scratch']
  %s0 = inlined_call_operand.vmem [shape: f32[8,128], index: 0, kind: input, shape index: {}]
  %s1 = inlined_call_operand.hbm [shape: f32[128,128], index: 1, kind: input, shape index: {}]
  %s2 = inlined_call_operand.vmem [shape: f32[1,128], index: 2, kind: input, shape index: {}]
  %s3 = inlined_call_operand.hbm [shape: f32[8,128], index: 3, kind: output, shape index: {}]
  %s4 = sld [smem:[#allocation0]]
  $region34: #{multiclass_forward.1} parent=0
    _
  %s6 = ssub.s32 1, %s4
  %s7 = scalar_select 0, %s6, %s4
  $region1: #{multiclass_forward.1} parent=0
    #allocation2 [shape = 'u8[65536]{0}', space=vmem, size = 0x10000, scoped, tag = 'input window, operand 1, single buffered']
    #allocation3 [shape = 's32[1]{0}', space=sflag, size = 0x4, scoped, tag = 'scoped memory for multiclass_forward.1']
    #allocation4 [shape = 's32[1]{0}', space=sflag, size = 0x4, scoped, tag = 'scoped memory for multiclass_forward.1']
    #allocation5 [shape = 'u8[4096]{0}', space=vmem, size = 0x1000, scoped, tag = 'output window, operand 0, single buffered']
    %8 = vsyncpa [#allocation3], 0
    %9 = vsyncpa [#allocation4], 0
    // Predicated region
    $region2: #{multiclass_forward.1} parent=1 // pred_check
      _
    $region3: #{multiclass_forward.1} parent=1 // pred_check_branch
      %11 = sbr.rel (0) target = $region5
    $region4: #{multiclass_forward.1} parent=1 // pred_region
      _
    $region5: #{multiclass_forward.1} parent=1 // pred_fallthru
      _
    // Predicated region
    $region6: #{multiclass_forward.1} parent=1 // pred_check
      _
    $region7: #{multiclass_forward.1} parent=1 // pred_check_branch
      %13 = sbr.rel (0) target = $region9
    $region8: #{multiclass_forward.1} parent=1 // pred_region
      %15 = vsyncadd [#allocation3], 0
      %s16 = sshll.u32 %s1, 4
      %s17 = int_to_ptr.hbm [resolvable:$true] %s16
      %s18 = sshll.u32 [#allocation2], 4
      %s19 = int_to_ptr.vmem [resolvable:$true] %s18
      %24 = dma.hbm_to_vmem [thread:$0]  %s17, 2048, %s19, [#allocation3], 128, 128, 8
    $region9: #{multiclass_forward.1} parent=1 // pred_fallthru
      _
    // Predicated region
    $region10: #{multiclass_forward.1} parent=1 // pred_check
      _
    $region11: #{multiclass_forward.1} parent=1 // pred_check_branch
      %26 = sbr.rel (0) target = $region13
    $region12: #{multiclass_forward.1} parent=1 // pred_region
      _
    $region13: #{multiclass_forward.1} parent=1 // pred_fallthru
      _
    // Predicated region
    $region14: #{multiclass_forward.1} parent=1 // pred_check
      _
    $region15: #{multiclass_forward.1} parent=1 // pred_check_branch
      %28 = sbr.rel (0) target = $region17
    $region16: #{multiclass_forward.1} parent=1 // pred_region
      %30 = dma.done [#allocation3], 2048
    $region17: #{multiclass_forward.1} parent=1 // pred_fallthru
      _
    %p31 = scmp.eq.s32.totalorder 0, 0
    // Predicated region
    $region18: #{multiclass_forward.1} parent=1 // pred_check
      %p32 = pneg %p31
    $region19: #{multiclass_forward.1} parent=1 // pred_check_branch
      %34 = sbr.rel (%p32) target = $region21
    $region20: #{multiclass_forward.1} parent=1 // pred_region
      %35 = vst [vmem:[#allocation5] sm:$0xff] 0.0
    $region21: #{multiclass_forward.1} parent=1 // pred_fallthru
      _
    %v36 = vld [vmem:[#allocation5] sm:$0xff]
    %v37 = vld [vmem:[%s0] sm:$0xff]
    %v38 = vld [vmem:[#allocation2] sm:$0xff]
    %v39 = vld [vmem:[#allocation2 + $0x8] sm:$0xff]
    %v40 = vld [vmem:[#allocation2 + $0x10] sm:$0xff]
    %v41 = vld [vmem:[#allocation2 + $0x18] sm:$0xff]
    %v42 = vld [vmem:[#allocation2 + $0x20] sm:$0xff]
    %v43 = vld [vmem:[#allocation2 + $0x28] sm:$0xff]
    %v44 = vld [vmem:[#allocation2 + $0x30] sm:$0xff]
    %v45 = vld [vmem:[#allocation2 + $0x38] sm:$0xff]
    %v46 = vld [vmem:[#allocation2 + $0x40] sm:$0xff]
    %v47 = vld [vmem:[#allocation2 + $0x48] sm:$0xff]
    %v48 = vld [vmem:[#allocation2 + $0x50] sm:$0xff]
    %v49 = vld [vmem:[#allocation2 + $0x58] sm:$0xff]
    %v50 = vld [vmem:[#allocation2 + $0x60] sm:$0xff]
    %v51 = vld [vmem:[#allocation2 + $0x68] sm:$0xff]
    %v52 = vld [vmem:[#allocation2 + $0x70] sm:$0xff]
    %v53 = vld [vmem:[#allocation2 + $0x78] sm:$0xff]
    %54 = vmatpush.msra.mxu0 %v53
    %55 = vmatpush.msra.mxu0 %v52
    %56 = vmatpush.msra.mxu0 %v51
    %57 = vmatpush.msra.mxu0 %v50
    %58 = vmatpush.msra.mxu0 %v49
    %59 = vmatpush.msra.mxu0 %v48
    %60 = vmatpush.msra.mxu0 %v47
    %61 = vmatpush.msra.mxu0 %v46
    %62 = vmatpush.msra.mxu0 %v45
    %63 = vmatpush.msra.mxu0 %v44
    %64 = vmatpush.msra.mxu0 %v43
    %65 = vmatpush.msra.mxu0 %v42
    %66 = vmatpush.msra.mxu0 %v41
    %67 = vmatpush.msra.mxu0 %v40
    %68 = vmatpush.msra.mxu0 %v39
    %69 = vmatpush.msra.mxu0 %v38
    %70 = vmatmul.f32.gmra.mxu0 %v37
    %v71 = vpop.f32.mrf.mxu0
    %v72 = vadd.f32 0.0, %v71
    %73 = vdwg.mxu0
    %v74 = vadd.f32 %v36, %v72
    %75 = vst [vmem:[#allocation5] sm:$0xff] %v74
    // Predicated region
    $region22: #{multiclass_forward.1} parent=1 // pred_check
      %p76 = pneg %p31
    $region23: #{multiclass_forward.1} parent=1 // pred_check_branch
      %78 = sbr.rel (%p76) target = $region25
    $region24: #{multiclass_forward.1} parent=1 // pred_region
      %v79 = vld [vmem:[#allocation5] sm:$0xff]
      %v80 = vld [vmem:[%s2] sm:$0x1]
      %v82 = vperm.slane %v80, 0
      %v84 = vadd.f32 %v79, %v82
      %85 = vst [vmem:[#allocation5] sm:$0xff] %v84
    $region25: #{multiclass_forward.1} parent=1 // pred_fallthru
      _
    // Predicated region
    $region26: #{multiclass_forward.1} parent=1 // pred_check
      _
    $region27: #{multiclass_forward.1} parent=1 // pred_check_branch
      %87 = sbr.rel (0) target = $region29
    $region28: #{multiclass_forward.1} parent=1 // pred_region
      %89 = vsyncadd [#allocation4], 0
      %s91 = sshll.u32 [#allocation5], 4
      %s92 = int_to_ptr.vmem [resolvable:$true] %s91
      %s93 = sshll.u32 %s3, 4
      %s94 = int_to_ptr.hbm [resolvable:$true] %s93
      %96 = dma.vmem_to_hbm [thread:$0]  %s92, 128, %s94, [#allocation4]
    $region29: #{multiclass_forward.1} parent=1 // pred_fallthru
      _
    // Predicated region
    $region30: #{multiclass_forward.1} parent=1 // pred_check
      _
    $region31: #{multiclass_forward.1} parent=1 // pred_check_branch
      %98 = sbr.rel (0) target = $region33
    $region32: #{multiclass_forward.1} parent=1 // pred_region
      %100 = dma.done [#allocation4], 128
    $region33: #{multiclass_forward.1} parent=1 // pred_fallthru
      _
    %101 = vsyncpa [#allocation3], 1
    %102 = vsyncpa [#allocation4], 1

</llo_original>
